<compile_context>
chip_gen: v6e
topology: v6e:2x2x1
jax: 0.10.0
libtpu: 0.0.40
codegen_flags: <defaults>
</compile_context>

<pallas_src>
import numpy as np
import jax
import jax.numpy as jnp
from jax import lax
from jax.experimental import pallas as pl
from jax.experimental.pallas import tpu as pltpu

# ---- config (cfg.model.*) --------------------------------------------------
HEAD_NUM = 4
HEAD_DIM = 8
NEWS_DIM = HEAD_NUM * HEAD_DIM          # 32
K_NEIGHBORS = 4
SIM_THRESHOLD = 0.1
BATCH = 8
CACHE_SIZE = 16

EPS = 1e-12                              # F.normalize eps
EPS2 = EPS * EPS


# ---------------------------------------------------------------------------
# Once-per-cache-update kernel: per-row inverse L2 norms of the cache.
# (Tiled over rows, "parallel"; hoisted out of the per-forward path.)
# ---------------------------------------------------------------------------
def _inv_norm_kernel(x_ref, o_ref):
    x = x_ref[...]
    sq = jnp.sum(x * x, axis=-1, keepdims=True)
    o_ref[...] = lax.rsqrt(jnp.maximum(sq, EPS2))


def cache_inv_norms(cache, row_tile=512):
    C, D = cache.shape
    rt = row_tile if (row_tile <= C and C % row_tile == 0) else C
    inv = pl.pallas_call(
        _inv_norm_kernel,
        out_shape=jax.ShapeDtypeStruct((C, 1), jnp.float32),
        grid=(C // rt,),
        in_specs=[pl.BlockSpec((rt, D), lambda i: (i, 0))],
        out_specs=pl.BlockSpec((rt, 1), lambda i: (i, 0)),
        compiler_params=pltpu.CompilerParams(dimension_semantics=("parallel",)),
    )(cache)
    # [1, C]: broadcastable over the [B_tile, C] similarity tile in the forward.
    return inv.reshape(1, C)


# ---------------------------------------------------------------------------
# Fused forward kernel: sim -> threshold -> top-k -> softmax -> weighted sum
#                       -> fusion MLP -> no-neighbor fallback, all in VMEM.
# ---------------------------------------------------------------------------
def user_neighbor_aggregator_forward(user_emb, cache_emb, cache_inv_norm, params,
                                     k=K_NEIGHBORS, threshold=SIM_THRESHOLD,
                                     b_tile=None):
    B, D = user_emb.shape
    C = cache_emb.shape[0]
    w1, b1, w2, b2 = params                      # [2D,D], [1,D], [D,D], [1,D]
    w1u, w1a = w1[:D], w1[D:]                    # split -> 2 accumulated MXU dots

    # Packed-key constants (Python ints -> jaxpr literals, nothing captured).
    # Positive IEEE-754 floats order like their int32 bit patterns; valid sims
    # are >= threshold > 0, so key = ((bits - bits(threshold)) << shift) | idx
    # packs value + lowest-index tie-break into one non-negative int32.
    assert threshold > 0.0
    shift = max(1, int(np.ceil(np.log2(C))))
    bias = int(np.float32(threshold).view(np.int32))
    assert ((int(np.float32(2.0).view(np.int32)) - bias) << shift) < 2 ** 31
    # TODO(synk): for very large C (> ~64) fall back to the two-reduce top-k.

    if b_tile is None:
        b_tile = 128 if B % 128 == 0 else B
    assert B % b_tile == 0

    def kernel(user_ref, cache_ref, invn_ref, w1u_ref, w1a_ref, b1_ref,
               w2_ref, b2_ref, out_ref):
        user = user_ref[...]                                       # [Bt, D]
        cache = cache_ref[...]                                     # [C, D] (raw, single stream)
        inv_c = invn_ref[...]                                      # [1, C]

        # --- cosine similarity: rsqrt -> EUP, dot -> MXU; cache inv-norms are
        # folded into sim instead of streaming a second normalized cache copy.
        u_sq = jnp.sum(user * user, axis=-1, keepdims=True)
        u_n = user * lax.rsqrt(jnp.maximum(u_sq, EPS2))
        sim = lax.dot_general(u_n, cache, (((1,), (1,)), ((), ())),
                              preferred_element_type=jnp.float32) * inv_c  # [Bt, C]

        # --- threshold + top-k via packed int keys: one XLU reduce per pass.
        valid = sim >= threshold
        bits = lax.bitcast_convert_type(sim, jnp.int32)
        col = lax.broadcasted_iota(jnp.int32, sim.shape, 1)
        keys = jnp.where(valid, ((bits - bias) << shift) | ((C - 1) - col), -1)

        row_max0 = jnp.max(keys, axis=-1, keepdims=True)           # [Bt, 1]
        has = row_max0 >= 0                                        # any valid neighbor
        pick = (keys == row_max0) & has                            # unique lane/row
        sel = pick
        keys = jnp.where(pick, -1, keys)
        for _ in range(k - 1):                                     # k = 4 total passes
            row_max = jnp.max(keys, axis=-1, keepdims=True)
            pick = (keys == row_max) & (row_max >= 0)
            sel = sel | pick
            keys = jnp.where(pick, -1, keys)

        # --- softmax over selected sims; max reused from pass 0 (decode key).
        m_bits = (row_max0 >> shift) + bias
        m = jnp.where(has, lax.bitcast_convert_type(m_bits, jnp.float32), 0.0)
        e = jnp.where(sel, jnp.exp(sim - m), 0.0)
        denom = jnp.sum(e, axis=-1, keepdims=True)
        w = e / jnp.maximum(denom, 1e-30)        # exact divide for PyTorch parity

        # --- weighted sum of RAW neighbor embeddings (same cache tile) --------
        agg = jnp.dot(w, cache, preferred_element_type=jnp.float32)      # [Bt, D]

        # --- fusion MLP: Linear(2D->D) as two accumulated dots (no concat
        # scratch), ReLU, Dropout(0.1)=identity in eval, Linear(D->D).
        h = (jnp.dot(user, w1u_ref[...], preferred_element_type=jnp.float32)
             + jnp.dot(agg, w1a_ref[...], preferred_element_type=jnp.float32)
             + b1_ref[...])
        h = jnp.maximum(h, 0.0)
        fused = (jnp.dot(h, w2_ref[...], preferred_element_type=jnp.float32)
                 + b2_ref[...])

        # --- users with no valid neighbor keep their original embedding -------
        out_ref[...] = jnp.where(has, fused, user)

    const2 = lambda i: (0, 0)
    return pl.pallas_call(
        kernel,
        out_shape=jax.ShapeDtypeStruct((B, D), jnp.float32),
        grid=(B // b_tile,),
        in_specs=[
            pl.BlockSpec((b_tile, D), lambda i: (i, 0)),   # user tile (pipelined)
            pl.BlockSpec((C, D), const2),                  # cache: VMEM-resident
            pl.BlockSpec((1, C), const2),                  # cache inv-norms
            pl.BlockSpec((D, D), const2),                  # w1[:D]
            pl.BlockSpec((D, D), const2),                  # w1[D:]
            pl.BlockSpec((1, D), const2),                  # b1
            pl.BlockSpec((D, D), const2),                  # w2
            pl.BlockSpec((1, D), const2),                  # b2
        ],
        out_specs=pl.BlockSpec((b_tile, D), lambda i: (i, 0)),
        compiler_params=pltpu.CompilerParams(
            dimension_semantics=("parallel",),
            vmem_limit_bytes=32 * 1024 * 1024),
    )(user_emb, cache_emb, cache_inv_norm, w1u, w1a, b1, w2, b2)


# ---------------------------------------------------------------------------
# Deterministic parameter init (torch.nn.Linear default: U(-1/sqrt(fan_in), .))
# ---------------------------------------------------------------------------
def init_params(key, d):
    k1, k2, k3, k4 = jax.random.split(key, 4)
    bound1 = 1.0 / np.sqrt(2.0 * d)
    W1 = jax.random.uniform(k1, (d, 2 * d), jnp.float32, -bound1, bound1)  # [out,in]
    b1 = jax.random.uniform(k2, (1, d), jnp.float32, -bound1, bound1)
    bound2 = 1.0 / np.sqrt(float(d))
    W2 = jax.random.uniform(k3, (d, d), jnp.float32, -bound2, bound2)
    b2 = jax.random.uniform(k4, (1, d), jnp.float32, -bound2, bound2)
    return (W1.T, b1, W2.T, b2)   # (w1 [2d,d], b1 [1,d], w2 [d,d], b2 [1,d])
    # TODO(synk): the neighbor_weight_learner sub-net is only used by the
    # 'learned_weight' aggregation_method and is not exercised here.


# ---------------------------------------------------------------------------
# Pure-numpy reference mirroring the PyTorch per-user loop (weighted_sum, eval)
# ---------------------------------------------------------------------------
def reference_forward(user_emb, cache_emb, params, k, threshold):
    w1, b1, w2, b2 = [np.asarray(p) for p in params]
    u = np.asarray(user_emb)
    c = np.asarray(cache_emb)
    B, D = u.shape
    w1u, w1a = w1[:D], w1[D:]
    out = np.zeros_like(u)
    cn = c / np.maximum(np.linalg.norm(c, axis=1, keepdims=True), 1e-12)
    for i in range(B):
        un = u[i] / max(np.linalg.norm(u[i]), 1e-12)
        sims = cn @ un
        valid = np.where(sims >= threshold)[0]
        if valid.size == 0:
            out[i] = u[i]
            continue
        kk = min(k, valid.size)
        order = valid[np.argsort(-sims[valid])[:kk]]
        w = np.exp(sims[order] - np.max(sims[order]))
        w = w / w.sum()
        agg = (c[order] * w[:, None]).sum(axis=0)
        h = np.maximum(u[i] @ w1u + agg @ w1a + b1[0], 0.0)
        out[i] = h @ w2 + b2[0]
    return out


if __name__ == "__main__":
    key = jax.random.PRNGKey(0)
    k_user, k_cache, k_params = jax.random.split(key, 3)

    user_embeddings = jax.random.normal(k_user, (BATCH, NEWS_DIM), jnp.float32)
    cached_embeddings = jax.random.normal(k_cache, (CACHE_SIZE, NEWS_DIM), jnp.float32)
    params = init_params(k_params, NEWS_DIM)

    # Cache inv-norms are computed once per cache update, not per forward call.
    cache_inv = cache_inv_norms(cached_embeddings)

    out = user_neighbor_aggregator_forward(
        user_embeddings, cached_embeddings, cache_inv, params)
    out = jax.block_until_ready(out)

    ref = reference_forward(user_embeddings, cached_embeddings, params,
                            K_NEIGHBORS, SIM_THRESHOLD)
    assert out.shape == (BATCH, NEWS_DIM)
    np.testing.assert_allclose(np.asarray(out), ref, rtol=1e-3, atol=1e-3)

    print("KERNEL_OK")
</pallas_src>

<mosaic_0001>
module attributes {stable_mosaic.version = 11 : i64} {
  func.func @_inv_norm_kernel(%arg0: i32, %arg1: memref<16x32xf32, #tpu.memory_space<vmem>>, %arg2: memref<16x1xf32, #tpu.memory_space<vmem>>) attributes {dimension_semantics = [#tpu.dimension_semantics<parallel>], iteration_bounds = array<i64: 1>, scalar_prefetch = 0 : i64, scratch_operands = 0 : i64, tpu.core_type = #tpu.core_type<tc>, window_params = [{transform_indices = @transform_0, window_bounds = array<i64: 16, 32>}, {transform_indices = @transform_1, window_bounds = array<i64: 16, 1>}]} {
    %c0 = arith.constant 0 : index
    %c0_0 = arith.constant 0 : index
    %0 = vector.load %arg1[%c0, %c0_0] : memref<16x32xf32, #tpu.memory_space<vmem>>, vector<16x32xf32>
    %1 = arith.mulf %0, %0 : vector<16x32xf32>
    %cst = arith.constant dense<0.000000e+00> : vector<16xf32>
    %2 = vector.multi_reduction <add>, %1, %cst [1] : vector<16x32xf32> to vector<16xf32>
    %3 = vector.shape_cast %2 : vector<16xf32> to vector<16x1xf32>
    %cst_1 = arith.constant 1.000000e-24 : f32
    %4 = vector.broadcast %cst_1 : f32 to vector<16x1xf32>
    %5 = arith.maximumf %3, %4 : vector<16x1xf32>
    %6 = math.rsqrt %5 : vector<16x1xf32>
    %c0_2 = arith.constant 0 : index
    %c0_3 = arith.constant 0 : index
    %7 = vector.load %arg2[%c0_2, %c0_3] : memref<16x1xf32, #tpu.memory_space<vmem>>, vector<16x1xf32>
    tpu.vector_store %arg2[%c0_2, %c0_3], %6 {strides = array<i32>} : memref<16x1xf32, #tpu.memory_space<vmem>>, vector<16x1xf32>,
    return
  }
  func.func @transform_0(%arg0: i32) -> (i32, i32) {
    %c0_i32 = arith.constant 0 : i32
    %c0_i32_0 = arith.constant 0 : i32
    return %arg0, %c0_i32 : i32, i32
  }
  func.func @transform_1(%arg0: i32) -> (i32, i32) {
    %c0_i32 = arith.constant 0 : i32
    %c0_i32_0 = arith.constant 0 : i32
    return %arg0, %c0_i32 : i32, i32
  }
}

</mosaic_0001>

<llo_original>
// kernel: tpu_custom_call.1
$region0: #{tpu_custom_call.1}
  #allocation0 [shape = 'u32[]', space=smem, size = 0x4, offset = 0x4, fixed_abs, tag = 'smem constant byte address 0x4 - core index']
  #allocation1 [shape = 'u32[144,128]{1,0:T(1,128)}', space=vmem, size = 0x12000, scoped, tag = 'internal scratch']
  %s0 = inlined_call_operand.hbm [shape: f32[16,32], index: 0, kind: input, shape index: {}]
  %s1 = inlined_call_operand.vmem [shape: f32[16,1], index: 1, kind: output, shape index: {}]
  %s2 = sld [smem:[#allocation0]]
  $region18: #{tpu_custom_call.1} parent=0
    _
  %s4 = ssub.s32 1, %s2
  %s5 = scalar_select 0, %s4, %s2
  $region1: #{tpu_custom_call.1} parent=0
    #allocation2 [shape = 'u8[8192]{0}', space=vmem, size = 0x2000, scoped, tag = 'input window, operand 0, single buffered']
    #allocation3 [shape = 's32[1]{0}', space=sflag, size = 0x4, scoped, tag = 'scoped memory for tpu_custom_call.1']
    %6 = vsyncpa [#allocation3], 0
    // Predicated region
    $region2: #{tpu_custom_call.1} parent=1 // pred_check
      _
    $region3: #{tpu_custom_call.1} parent=1 // pred_check_branch
      %8 = sbr.rel (0) target = $region5
    $region4: #{tpu_custom_call.1} parent=1 // pred_region
      %s10 = ssub.s32 256, 256
      %11 = vsyncadd [#allocation3], %s10
      %s12 = sshll.u32 [#allocation2], 4
      %s13 = int_to_ptr.vmem [resolvable:$true] %s12
      %18 = dma.hbm_to_vmem [thread:$0]  %s0, 256, %s13, [#allocation3], 128, 128, 8
    $region5: #{tpu_custom_call.1} parent=1 // pred_fallthru
      _
    // Predicated region
    $region6: #{tpu_custom_call.1} parent=1 // pred_check
      _
    $region7: #{tpu_custom_call.1} parent=1 // pred_check_branch
      %20 = sbr.rel (0) target = $region9
    $region8: #{tpu_custom_call.1} parent=1 // pred_region
      %21 = dma.done [#allocation3], 256
    $region9: #{tpu_custom_call.1} parent=1 // pred_fallthru
      _
    %v22 = vld [vmem:[#allocation2] sm:$0xff]
    %v23 = vld [vmem:[#allocation2 + $0x8] sm:$0xff]
    %v24 = vmul.f32 %v22, %v22
    %v25 = vmul.f32 %v23, %v23
    %vm26 = vcmask 261120
    %v27 = vsel %vm26, %v24, 0.0
    %28 = vadd.xlane.f32.xlu0 %v27
    %v29 = vpop.xlane.xlu0 %28
    %v30 = vsel %vm26, %v25, 0.0
    %31 = vadd.xlane.f32.xlu0 %v30
    %v32 = vpop.xlane.xlu0 %31
    %v33 = vmax.f32 %v29, 1e-24
    %v34 = vmax.f32 %v32, 1e-24
    %v35 = vrsqrt.pop %v33
    %v36 = vrsqrt.pop %v34
    %vm37 = vcmask 7168
    %38 = vst.msk [vmem:[%s1] sm:$0xff] %vm37, %v35
    %39 = vst.msk [vmem:[%s1 + $0x8] sm:$0xff] %vm37, %v36
    // Predicated region
    $region10: #{tpu_custom_call.1} parent=1 // pred_check
      _
    $region11: #{tpu_custom_call.1} parent=1 // pred_check_branch
      %41 = sbr.rel (0) target = $region13
    $region12: #{tpu_custom_call.1} parent=1 // pred_region
      _
    $region13: #{tpu_custom_call.1} parent=1 // pred_fallthru
      _
    // Predicated region
    $region14: #{tpu_custom_call.1} parent=1 // pred_check
      _
    $region15: #{tpu_custom_call.1} parent=1 // pred_check_branch
      %43 = sbr.rel (0) target = $region17
    $region16: #{tpu_custom_call.1} parent=1 // pred_region
      _
    $region17: #{tpu_custom_call.1} parent=1 // pred_fallthru
      _
    %44 = vsyncpa [#allocation3], 1

</llo_original>
